<compile_context>
chip_gen: v5e
topology: v5e:2x2
jax: 0.10.0
libtpu: 0.0.40
codegen_flags: <defaults>
</compile_context>

<pallas_src>
import jax
import jax.numpy as jnp
from jax.experimental import pallas as pl
from jax.experimental.pallas import tpu as pltpu

LANE = 128  # TPU lane width: pad action & hidden axes to this for lane-dense vregs.


def _round_up(n, m):
    return ((n + m - 1) // m) * m


def actor_kernel(x_ref, w1_ref, b1_ref, w2_ref, b2_ref, out_ref):
    # Layer 1: x @ W1 + b1, ReLU. MXU matmul with f32 accumulation; bias/ReLU on VPU.
    h = jnp.dot(x_ref[...], w1_ref[...], preferred_element_type=jnp.float32)
    h = jnp.maximum(h + b1_ref[...], 0.0)

    # Layer 2: lane-dense (TB, 128) logits. Padded action lanes get -1e30 from b2_pad
    # (mask baked into the bias at init), so no iota/select is needed here.
    h = h.astype(w2_ref.dtype)
    logits = jnp.dot(h, w2_ref[...], preferred_element_type=jnp.float32) + b2_ref[...]

    # Numerically-stable softmax along the action axis (dim=1). exp(-1e30 - m)
    # underflows to exactly 0.0 in f32, so padded lanes contribute nothing.
    m = jnp.max(logits, axis=1, keepdims=True)
    e = jnp.exp(logits - m)
    denom = jnp.sum(e, axis=1, keepdims=True)
    out_ref[...] = (e * pl.reciprocal(denom, approx=False)).astype(out_ref.dtype)


def prepare_actor_params(w1, b1, w2, b2, *, matmul_dtype=jnp.float32):
    """One-time repack of PyTorch-layout Linear params (init-time, not per call).

    w1: (H, S), b1: (H,), w2: (A, H), b2: (A,)
      -> (w1_t_pad (S, Hp), b1_pad (1, Hp), w2_t_pad (Hp, Ap), b2_pad (1, Ap), A)
    Hp/Ap are padded to 128 lanes. Padded action lanes of b2 carry -1e30 (softmax mask).
    Set matmul_dtype=jnp.bfloat16 on v6e/v7x for the bf16 MXU path (looser numerics);
    biases and all softmax math stay f32.
    """
    H, S = w1.shape
    A = w2.shape[0]
    H_pad = _round_up(max(H, 1), LANE)
    A_pad = _round_up(max(A, 1), LANE)

    w1_t = jnp.transpose(w1)                                            # (S, H)
    w1_t_pad = jnp.zeros((S, H_pad), jnp.float32).at[:, :H].set(w1_t)
    b1_pad = jnp.zeros((1, H_pad), jnp.float32).at[0, :H].set(b1)       # pad -> ReLU(0)=0

    w2_t = jnp.transpose(w2)                                            # (H, A)
    w2_t_pad = jnp.zeros((H_pad, A_pad), jnp.float32).at[:H, :A].set(w2_t)
    b2_pad = jnp.full((1, A_pad), -1e30, jnp.float32).at[0, :A].set(b2)  # baked mask

    return (w1_t_pad.astype(matmul_dtype), b1_pad,
            w2_t_pad.astype(matmul_dtype), b2_pad, A)


def actor_forward(x, params, *, tile_b=2048):
    """x: (B, S) f32; params from prepare_actor_params. Returns (B, A) action probs."""
    w1_t, b1_2d, w2_t, b2_2d, A = params
    B, S = x.shape
    H_pad = w1_t.shape[1]
    A_pad = w2_t.shape[1]

    if x.dtype != w1_t.dtype:
        x = x.astype(w1_t.dtype)

    # Batch tile: multiple of 8 sublanes; whole batch in a single tile when small.
    TB = min(tile_b, _round_up(B, 8))
    num_steps = pl.cdiv(B, TB)
    # v7x megacore: when more than one step is needed, prefer an even step count so
    # the "parallel" batch axis gives both TensorCores work.
    if num_steps > 1 and num_steps % 2 == 1:
        TB = _round_up(pl.cdiv(B, num_steps + 1), 8)
        num_steps = pl.cdiv(B, TB)

    out_pad = pl.pallas_call(
        actor_kernel,
        out_shape=jax.ShapeDtypeStruct((B, A_pad), jnp.float32),
        grid=(num_steps,),
        in_specs=[
            pl.BlockSpec((TB, S), lambda i: (i, 0)),          # x: tiled along batch
            pl.BlockSpec((S, H_pad), lambda i: (0, 0)),       # weights/biases stay
            pl.BlockSpec((1, H_pad), lambda i: (0, 0)),       # VMEM-resident across
            pl.BlockSpec((H_pad, A_pad), lambda i: (0, 0)),   # grid steps (constant
            pl.BlockSpec((1, A_pad), lambda i: (0, 0)),       # index_map)
        ],
        out_specs=pl.BlockSpec((TB, A_pad), lambda i: (i, 0)),
        compiler_params=pltpu.CompilerParams(
            dimension_semantics=("parallel",)),   # 2-TC shard on v7x; harmless elsewhere
    )(x, w1_t, b1_2d, w2_t, b2_2d)

    # Slice off the lane padding for the module's (B, A) interface (see TODO above).
    return out_pad[:, :A]


def init_actor_params(key, state_space, action_space, hidden_size=64):
    """Deterministic init mimicking nn.Linear default (uniform +/- 1/sqrt(fan_in))."""
    k1, k2, k3, k4 = jax.random.split(key, 4)
    lim1 = 1.0 / jnp.sqrt(jnp.float32(state_space))
    lim2 = 1.0 / jnp.sqrt(jnp.float32(hidden_size))
    w1 = jax.random.uniform(k1, (hidden_size, state_space), jnp.float32, -lim1, lim1)
    b1 = jax.random.uniform(k2, (hidden_size,), jnp.float32, -lim1, lim1)
    w2 = jax.random.uniform(k3, (action_space, hidden_size), jnp.float32, -lim2, lim2)
    b2 = jax.random.uniform(k4, (action_space,), jnp.float32, -lim2, lim2)
    return w1, b1, w2, b2


if __name__ == "__main__":
    key = jax.random.PRNGKey(0)
    k_params, k_x = jax.random.split(key)

    batch = 8
    state_space = 32
    action_space = 4
    hidden_size = 64

    w1, b1, w2, b2 = init_actor_params(k_params, state_space, action_space, hidden_size)
    x = jax.random.normal(k_x, (batch, state_space), jnp.float32)

    # One-time parameter repack (pre-transposed, lane-padded, mask baked into b2).
    params = prepare_actor_params(w1, b1, w2, b2)

    probs = actor_forward(x, params)
    probs = jax.block_until_ready(probs)

    # Reference check in plain JAX against the original PyTorch-layout math.
    h_ref = jnp.maximum(x @ w1.T + b1, 0.0)
    logits_ref = h_ref @ w2.T + b2
    probs_ref = jax.nn.softmax(logits_ref, axis=1)
    assert probs.shape == (batch, action_space)
    assert jnp.allclose(probs, probs_ref, atol=1e-5, rtol=1e-5)
    assert jnp.allclose(jnp.sum(probs, axis=1), 1.0, atol=1e-5)

    print("KERNEL_OK")
</pallas_src>

<mosaic_0001>
module attributes {stable_mosaic.version = 11 : i64} {
  func.func @actor_kernel(%arg0: i32, %arg1: memref<8x32xf32, #tpu.memory_space<vmem>>, %arg2: memref<32x128xf32, #tpu.memory_space<vmem>>, %arg3: memref<1x128xf32, #tpu.memory_space<vmem>>, %arg4: memref<128x128xf32, #tpu.memory_space<vmem>>, %arg5: memref<1x128xf32, #tpu.memory_space<vmem>>, %arg6: memref<8x128xf32, #tpu.memory_space<vmem>>) attributes {dimension_semantics = [#tpu.dimension_semantics<parallel>], iteration_bounds = array<i64: 1>, scalar_prefetch = 0 : i64, scratch_operands = 0 : i64, tpu.core_type = #tpu.core_type<tc>, window_params = [{transform_indices = @transform_0, window_bounds = array<i64: 8, 32>}, {pipeline_mode = #tpu.pipeline_mode<synchronous>, transform_indices = @transform_1, window_bounds = array<i64: 32, 128>}, {pipeline_mode = #tpu.pipeline_mode<synchronous>, transform_indices = @transform_2, window_bounds = array<i64: 1, 128>}, {pipeline_mode = #tpu.pipeline_mode<synchronous>, transform_indices = @transform_3, window_bounds = array<i64: 128, 128>}, {pipeline_mode = #tpu.pipeline_mode<synchronous>, transform_indices = @transform_4, window_bounds = array<i64: 1, 128>}, {transform_indices = @transform_5, window_bounds = array<i64: 8, 128>}]} {
    %c0 = arith.constant 0 : index
    %c0_0 = arith.constant 0 : index
    %0 = vector.load %arg1[%c0, %c0_0] : memref<8x32xf32, #tpu.memory_space<vmem>>, vector<8x32xf32>
    %c0_1 = arith.constant 0 : index
    %c0_2 = arith.constant 0 : index
    %1 = vector.load %arg2[%c0_1, %c0_2] : memref<32x128xf32, #tpu.memory_space<vmem>>, vector<32x128xf32>
    %cst = arith.constant dense<0.000000e+00> : vector<8x128xf32>
    %2 = tpu.matmul %0, %1, %cst {dimension_numbers = #tpu.dot_dimension_numbers<[1], [0], [0], [1], [0, 0, 1, 1], [], []>} : vector<8x32xf32>, vector<32x128xf32>, vector<8x128xf32> -> vector<8x128xf32>
    %c0_3 = arith.constant 0 : index
    %c0_4 = arith.constant 0 : index
    %3 = vector.load %arg3[%c0_3, %c0_4] : memref<1x128xf32, #tpu.memory_space<vmem>>, vector<1x128xf32>
    %4 = vector.broadcast %3 : vector<1x128xf32> to vector<8x128xf32>
    %5 = arith.addf %2, %4 : vector<8x128xf32>
    %cst_5 = arith.constant 0.000000e+00 : f32
    %6 = vector.broadcast %cst_5 : f32 to vector<8x128xf32>
    %7 = arith.maximumf %5, %6 : vector<8x128xf32>
    %c0_6 = arith.constant 0 : index
    %c0_7 = arith.constant 0 : index
    %8 = vector.load %arg4[%c0_6, %c0_7] : memref<128x128xf32, #tpu.memory_space<vmem>>, vector<128x128xf32>
    %cst_8 = arith.constant dense<0.000000e+00> : vector<8x128xf32>
    %9 = tpu.matmul %7, %8, %cst_8 {dimension_numbers = #tpu.dot_dimension_numbers<[1], [0], [0], [1], [0, 0, 1, 1], [], []>} : vector<8x128xf32>, vector<128x128xf32>, vector<8x128xf32> -> vector<8x128xf32>
    %c0_9 = arith.constant 0 : index
    %c0_10 = arith.constant 0 : index
    %10 = vector.load %arg5[%c0_9, %c0_10] : memref<1x128xf32, #tpu.memory_space<vmem>>, vector<1x128xf32>
    %11 = vector.broadcast %10 : vector<1x128xf32> to vector<8x128xf32>
    %12 = arith.addf %9, %11 : vector<8x128xf32>
    %cst_11 = arith.constant dense<0xFF800000> : vector<8xf32>
    %13 = vector.multi_reduction <maximumf>, %12, %cst_11 [1] : vector<8x128xf32> to vector<8xf32>
    %14 = vector.shape_cast %13 : vector<8xf32> to vector<8x1xf32>
    %15 = vector.broadcast %14 : vector<8x1xf32> to vector<8x128xf32>
    %16 = arith.subf %12, %15 : vector<8x128xf32>
    %17 = math.exp %16 : vector<8x128xf32>
    %cst_12 = arith.constant dense<0.000000e+00> : vector<8xf32>
    %18 = vector.multi_reduction <add>, %17, %cst_12 [1] : vector<8x128xf32> to vector<8xf32>
    %19 = vector.shape_cast %18 : vector<8xf32> to vector<8x1xf32>
    %20 = tpu.reciprocal %19 : vector<8x1xf32> -> vector<8x1xf32>
    %21 = vector.broadcast %20 : vector<8x1xf32> to vector<8x128xf32>
    %22 = arith.mulf %17, %21 : vector<8x128xf32>
    %c0_13 = arith.constant 0 : index
    %c0_14 = arith.constant 0 : index
    %23 = vector.load %arg6[%c0_13, %c0_14] : memref<8x128xf32, #tpu.memory_space<vmem>>, vector<8x128xf32>
    tpu.vector_store %arg6[%c0_13, %c0_14], %22 {strides = array<i32>} : memref<8x128xf32, #tpu.memory_space<vmem>>, vector<8x128xf32>,
    return
  }
  func.func @transform_0(%arg0: i32) -> (i32, i32) {
    %c0_i32 = arith.constant 0 : i32
    %c0_i32_0 = arith.constant 0 : i32
    return %arg0, %c0_i32 : i32, i32
  }
  func.func @transform_1(%arg0: i32) -> (i32, i32) {
    %c0_i32 = arith.constant 0 : i32
    %c0_i32_0 = arith.constant 0 : i32
    %c0_i32_1 = arith.constant 0 : i32
    return %c0_i32, %c0_i32_0 : i32, i32
  }
  func.func @transform_2(%arg0: i32) -> (i32, i32) {
    %c0_i32 = arith.constant 0 : i32
    %c0_i32_0 = arith.constant 0 : i32
    %c0_i32_1 = arith.constant 0 : i32
    return %c0_i32, %c0_i32_0 : i32, i32
  }
  func.func @transform_3(%arg0: i32) -> (i32, i32) {
    %c0_i32 = arith.constant 0 : i32
    %c0_i32_0 = arith.constant 0 : i32
    %c0_i32_1 = arith.constant 0 : i32
    return %c0_i32, %c0_i32_0 : i32, i32
  }
  func.func @transform_4(%arg0: i32) -> (i32, i32) {
    %c0_i32 = arith.constant 0 : i32
    %c0_i32_0 = arith.constant 0 : i32
    %c0_i32_1 = arith.constant 0 : i32
    return %c0_i32, %c0_i32_0 : i32, i32
  }
  func.func @transform_5(%arg0: i32) -> (i32, i32) {
    %c0_i32 = arith.constant 0 : i32
    %c0_i32_0 = arith.constant 0 : i32
    return %arg0, %c0_i32 : i32, i32
  }
}

</mosaic_0001>

<llo_original>
// kernel: tpu_custom_call.1
$region0: #{tpu_custom_call.1}
  #allocation0 [shape = 'u32[]', space=smem, size = 0x4, offset = 0x4, fixed_abs, tag = 'smem constant byte address 0x4 - core index']
  #allocation1 [shape = 'u32[72,128]{1,0:T(1,128)}', space=vmem, size = 0x9000, scoped, tag = 'internal scratch']
  %s0 = inlined_call_operand.hbm [shape: f32[8,32], index: 0, kind: input, shape index: {}]
  %s1 = inlined_call_operand.hbm [shape: f32[32,128], index: 1, kind: input, shape index: {}]
  %s2 = inlined_call_operand.vmem [shape: f32[1,128], index: 2, kind: input, shape index: {}]
  %s3 = inlined_call_operand.hbm [shape: f32[128,128], index: 3, kind: input, shape index: {}]
  %s4 = inlined_call_operand.vmem [shape: f32[1,128], index: 4, kind: input, shape index: {}]
  %s5 = inlined_call_operand.hbm [shape: f32[8,128], index: 5, kind: output, shape index: {}]
  %s6 = sld [smem:[#allocation0]]
  $region42: #{tpu_custom_call.1} parent=0
    _
  %s8 = ssub.s32 1, %s6
  %s9 = scalar_select 0, %s8, %s6
  $region1: #{tpu_custom_call.1} parent=0
    #allocation2 [shape = 'u8[4096]{0}', space=vmem, size = 0x1000, scoped, tag = 'input window, operand 0, single buffered']
    #allocation3 [shape = 's32[1]{0}', space=sflag, size = 0x4, scoped, tag = 'scoped memory for tpu_custom_call.1']
    #allocation4 [shape = 's32[1]{0}', space=sflag, size = 0x4, scoped, tag = 'scoped memory for tpu_custom_call.1']
    #allocation5 [shape = 'u8[16384]{0}', space=vmem, size = 0x4000, scoped, tag = 'input window, operand 1, single buffered']
    #allocation6 [shape = 's32[1]{0}', space=sflag, size = 0x4, scoped, tag = 'scoped memory for tpu_custom_call.1']
    #allocation7 [shape = 'u8[65536]{0}', space=vmem, size = 0x10000, scoped, tag = 'input window, operand 3, single buffered']
    #allocation8 [shape = 'u8[4096]{0}', space=vmem, size = 0x1000, scoped, tag = 'output window, operand 0, single buffered']
    %10 = vsyncpa [#allocation3], 0
    %11 = vsyncpa [#allocation6], 0
    %12 = vsyncpa [#allocation4], 0
    // Predicated region
    $region2: #{tpu_custom_call.1} parent=1 // pred_check
      _
    $region3: #{tpu_custom_call.1} parent=1 // pred_check_branch
      %14 = sbr.rel (0) target = $region5
    $region4: #{tpu_custom_call.1} parent=1 // pred_region
      %16 = vsyncadd [#allocation3], 0
      %s18 = sshll.u32 %s0, 4
      %s19 = int_to_ptr.hbm [resolvable:$true] %s18
      %s20 = sshll.u32 [#allocation2], 4
      %s21 = int_to_ptr.vmem [resolvable:$true] %s20
      %23 = dma.hbm_to_vmem [thread:$0]  %s19, 128, %s21, [#allocation3]
    $region5: #{tpu_custom_call.1} parent=1 // pred_fallthru
      _
    // Predicated region
    $region6: #{tpu_custom_call.1} parent=1 // pred_check
      _
    $region7: #{tpu_custom_call.1} parent=1 // pred_check_branch
      %25 = sbr.rel (0) target = $region9
    $region8: #{tpu_custom_call.1} parent=1 // pred_region
      %27 = vsyncadd [#allocation6], 0
      %s28 = sshll.u32 %s1, 4
      %s29 = int_to_ptr.hbm [resolvable:$true] %s28
      %s30 = sshll.u32 [#allocation5], 4
      %s31 = int_to_ptr.vmem [resolvable:$true] %s30
      %36 = dma.hbm_to_vmem [thread:$0]  %s29, 512, %s31, [#allocation6], 128, 128, 8
    $region9: #{tpu_custom_call.1} parent=1 // pred_fallthru
      _
    // Predicated region
    $region10: #{tpu_custom_call.1} parent=1 // pred_check
      _
    $region11: #{tpu_custom_call.1} parent=1 // pred_check_branch
      %38 = sbr.rel (0) target = $region13
    $region12: #{tpu_custom_call.1} parent=1 // pred_region
      _
    $region13: #{tpu_custom_call.1} parent=1 // pred_fallthru
      _
    // Predicated region
    $region14: #{tpu_custom_call.1} parent=1 // pred_check
      _
    $region15: #{tpu_custom_call.1} parent=1 // pred_check_branch
      %40 = sbr.rel (0) target = $region17
    $region16: #{tpu_custom_call.1} parent=1 // pred_region
      %42 = vsyncadd [#allocation6], 0
      %s43 = sshll.u32 %s3, 4
      %s44 = int_to_ptr.hbm [resolvable:$true] %s43
      %s45 = sshll.u32 [#allocation7], 4
      %s46 = int_to_ptr.vmem [resolvable:$true] %s45
      %51 = dma.hbm_to_vmem [thread:$0]  %s44, 2048, %s46, [#allocation6], 128, 128, 8
    $region17: #{tpu_custom_call.1} parent=1 // pred_fallthru
      _
    // Predicated region
    $region18: #{tpu_custom_call.1} parent=1 // pred_check
      _
    $region19: #{tpu_custom_call.1} parent=1 // pred_check_branch
      %53 = sbr.rel (0) target = $region21
    $region20: #{tpu_custom_call.1} parent=1 // pred_region
      _
    $region21: #{tpu_custom_call.1} parent=1 // pred_fallthru
      _
    // Predicated region
    $region22: #{tpu_custom_call.1} parent=1 // pred_check
      _
    $region23: #{tpu_custom_call.1} parent=1 // pred_check_branch
      %55 = sbr.rel (0) target = $region25
    $region24: #{tpu_custom_call.1} parent=1 // pred_region
      %57 = dma.done [#allocation3], 128
    $region25: #{tpu_custom_call.1} parent=1 // pred_fallthru
      _
    // Predicated region
    $region26: #{tpu_custom_call.1} parent=1 // pred_check
      _
    $region27: #{tpu_custom_call.1} parent=1 // pred_check_branch
      %59 = sbr.rel (0) target = $region29
    $region28: #{tpu_custom_call.1} parent=1 // pred_region
      %61 = dma.done [#allocation6], 512
    $region29: #{tpu_custom_call.1} parent=1 // pred_fallthru
      _
    // Predicated region
    $region30: #{tpu_custom_call.1} parent=1 // pred_check
      _
    $region31: #{tpu_custom_call.1} parent=1 // pred_check_branch
      %63 = sbr.rel (0) target = $region33
    $region32: #{tpu_custom_call.1} parent=1 // pred_region
      %65 = dma.done [#allocation6], 2048
    $region33: #{tpu_custom_call.1} parent=1 // pred_fallthru
      _
    %v66 = vld [vmem:[#allocation2] sm:$0xff]
    %v67 = vld [vmem:[#allocation5] sm:$0xff]
    %v68 = vld [vmem:[#allocation5 + $0x8] sm:$0xff]
    %v69 = vld [vmem:[#allocation5 + $0x10] sm:$0xff]
    %v70 = vld [vmem:[#allocation5 + $0x18] sm:$0xff]
    %v71 = vld [vmem:[%s2] sm:$0x1]
    %v73 = vperm.slane %v71, 0
    %vm75 = vcmask 261120
    %v77 = vsel %vm75, %v66, 0
    %79 = vmatpush.msra.mxu0 0.0
    %80 = vmatpush.msra.mxu0 0.0
    %81 = vmatpush.msra.mxu0 0.0
    %82 = vmatpush.msra.mxu0 0.0
    %83 = vmatpush.msra.mxu0 0.0
    %84 = vmatpush.msra.mxu0 0.0
    %85 = vmatpush.msra.mxu0 0.0
    %86 = vmatpush.msra.mxu0 0.0
    %87 = vmatpush.msra.mxu0 0.0
    %88 = vmatpush.msra.mxu0 0.0
    %89 = vmatpush.msra.mxu0 0.0
    %90 = vmatpush.msra.mxu0 0.0
    %91 = vmatpush.msra.mxu0 %v70
    %92 = vmatpush.msra.mxu0 %v69
    %93 = vmatpush.msra.mxu0 %v68
    %94 = vmatpush.msra.mxu0 %v67
    %95 = vmatmul.f32.gmra.mxu0 %v77
    %v96 = vpop.f32.mrf.mxu0
    %v97 = vadd.f32 %v73, %v96
    %98 = vdwg.mxu0
    %v99 = vmax.f32 %v97, 0.0
    %v100 = vld [vmem:[#allocation7] sm:$0xff]
    %v101 = vld [vmem:[#allocation7 + $0x8] sm:$0xff]
    %v102 = vld [vmem:[#allocation7 + $0x10] sm:$0xff]
    %v103 = vld [vmem:[#allocation7 + $0x18] sm:$0xff]
    %v104 = vld [vmem:[#allocation7 + $0x20] sm:$0xff]
    %v105 = vld [vmem:[#allocation7 + $0x28] sm:$0xff]
    %v106 = vld [vmem:[#allocation7 + $0x30] sm:$0xff]
    %v107 = vld [vmem:[#allocation7 + $0x38] sm:$0xff]
    %v108 = vld [vmem:[#allocation7 + $0x40] sm:$0xff]
    %v109 = vld [vmem:[#allocation7 + $0x48] sm:$0xff]
    %v110 = vld [vmem:[#allocation7 + $0x50] sm:$0xff]
    %v111 = vld [vmem:[#allocation7 + $0x58] sm:$0xff]
    %v112 = vld [vmem:[#allocation7 + $0x60] sm:$0xff]
    %v113 = vld [vmem:[#allocation7 + $0x68] sm:$0xff]
    %v114 = vld [vmem:[#allocation7 + $0x70] sm:$0xff]
    %v115 = vld [vmem:[#allocation7 + $0x78] sm:$0xff]
    %v116 = vld [vmem:[%s4] sm:$0x1]
    %v118 = vperm.slane %v116, 0
    %120 = vmatpush.msra.mxu0 %v115
    %121 = vmatpush.msra.mxu0 %v114
    %122 = vmatpush.msra.mxu0 %v113
    %123 = vmatpush.msra.mxu0 %v112
    %124 = vmatpush.msra.mxu0 %v111
    %125 = vmatpush.msra.mxu0 %v110
    %126 = vmatpush.msra.mxu0 %v109
    %127 = vmatpush.msra.mxu0 %v108
    %128 = vmatpush.msra.mxu0 %v107
    %129 = vmatpush.msra.mxu0 %v106
    %130 = vmatpush.msra.mxu0 %v105
    %131 = vmatpush.msra.mxu0 %v104
    %132 = vmatpush.msra.mxu0 %v103
    %133 = vmatpush.msra.mxu0 %v102
    %134 = vmatpush.msra.mxu0 %v101
    %135 = vmatpush.msra.mxu0 %v100
    %136 = vmatmul.f32.gmra.mxu0 %v99
    %v137 = vpop.f32.mrf.mxu0
    %v138 = vadd.f32 %v118, %v137
    %139 = vdwg.mxu0
    %140 = vmax.xlane.f32.xlu0 %v138
    %v141 = vpop.xlane.xlu0 %140
    %v142 = vsub.f32 %v138, %v141
    %v143 = vmul.f32 %v142, 1.442695
    %v144 = vpow.pop %v143
    %145 = vadd.xlane.f32.xlu0 %v144
    %v146 = vpop.xlane.xlu0 %145
    %v147 = vrcp.pop %v146
    %v148 = vmul.f32 %v146, %v147
    %v149 = vsub.f32 1.0, %v148
    %v150 = vmul.f32 %v147, %v149
    %v151 = vadd.f32 %v147, %v150
    %vm152 = vweird.f32 %v146
    %vm153 = vweird.f32 %v147
    %vm154 = vmor %vm152, %vm153
    %v155 = vsel %vm154, %v147, %v151
    %v156 = vand.u32 2147483647, %v146
    %vm157 = vcmp.eq.f32.partialorder %v156, 8.507059e+37
    %v158 = vand.u32 %v146, 2147483648
    %v159 = vor.u32 1.1754944e-38, %v158
    %v160 = vsel %vm157, %v159, %v155
    %v161 = vmul.f32 %v144, %v160
    %162 = vst [vmem:[#allocation8] sm:$0xff] %v161
    // Predicated region
    $region34: #{tpu_custom_call.1} parent=1 // pred_check
      _
    $region35: #{tpu_custom_call.1} parent=1 // pred_check_branch
      %164 = sbr.rel (0) target = $region37
    $region36: #{tpu_custom_call.1} parent=1 // pred_region
      %166 = vsyncadd [#allocation4], 0
      %s168 = sshll.u32 [#allocation8], 4
      %s169 = int_to_ptr.vmem [resolvable:$true] %s168
      %s170 = sshll.u32 %s5, 4
      %s171 = int_to_ptr.hbm [resolvable:$true] %s170
      %173 = dma.vmem_to_hbm [thread:$0]  %s169, 128, %s171, [#allocation4]
    $region37: #{tpu_custom_call.1} parent=1 // pred_fallthru
      _
    // Predicated region
    $region38: #{tpu_custom_call.1} parent=1 // pred_check
      _
    $region39: #{tpu_custom_call.1} parent=1 // pred_check_branch
      %175 = sbr.rel (0) target = $region41
    $region40: #{tpu_custom_call.1} parent=1 // pred_region
      %177 = dma.done [#allocation4], 128
    $region41: #{tpu_custom_call.1} parent=1 // pred_fallthru
      _
    %178 = vsyncpa [#allocation3], 1
    %179 = vsyncpa [#allocation6], 1
    %180 = vsyncpa [#allocation4], 1

</llo_original>
